<compile_context>
chip_gen: v7x
topology: tpu7x:2x2x1
jax: 0.10.0
libtpu: 0.0.40
codegen_flags: <defaults>
</compile_context>

<pallas_src>
from functools import partial

import jax
import jax.numpy as jnp
from jax.experimental import pallas as pl
from jax.experimental.pallas import tpu as pltpu


# ----------------------------- small helpers --------------------------------

def _round_up(n, m):
    return ((n + m - 1) // m) * m


def _largest_divisor_at_most(n, cap):
    cap = max(1, min(n, cap))
    for d in range(cap, 0, -1):
        if n % d == 0:
            return d
    return 1


def _tpu_kind():
    try:
        return jax.devices()[0].device_kind.lower()
    except Exception:
        return ""


def _vmem_budget_bytes(kind):
    if "v7" in kind:
        return 48 * 1024 * 1024       # 64 MiB physical/TC -> leave compiler headroom
    if any(t in kind for t in ("v4", "v5", "v6")):
        return 96 * 1024 * 1024       # 128 MiB physical
    return 48 * 1024 * 1024           # unknown chip: be conservative


def _two_tensorcores(kind):
    return "v7" in kind


# ------------------------------- kernels -------------------------------------

def _compute_shift(gram, wdyn_ref, bdyn_ref, imp_ref):
    """gram: (bt, C, C) f32 -> per-channel shift s: (bt, C) f32."""
    bt, c, _ = gram.shape
    # Row-major flatten matches torch's gram.view(-1, C*C).  (Negligible at small C;
    # TODO(synk): for very large C contract gram directly against w_dyn.reshape(n,C,C)
    # to avoid the in-kernel relayout of the flatten.)
    gram_flat = gram.reshape(bt, c * c)                           # (bt, C*C)
    # nn.Linear form on the MXU: p = gram_flat @ W^T + b (W kept lane-dense along C*C).
    p = jax.lax.dot_general(
        gram_flat, wdyn_ref[...],
        dimension_numbers=(((1,), (1,)), ((), ())),
        preferred_element_type=jnp.float32,
    ) + bdyn_ref[...]                                             # (bt, num_imp)
    # Normalize over num_imp per batch element (exact division, matches reference).
    p = p / (jnp.sum(p, axis=1, keepdims=True) + jnp.float32(1e-12))
    # s[b, c] = sum_j imp[c, j] * p_norm[b, j]   (MXU again).
    s = jax.lax.dot_general(
        p, imp_ref[...],
        dimension_numbers=(((1,), (1,)), ((), ())),
        preferred_element_type=jnp.float32,
    )                                                             # (bt, C)
    return s


def _implicit_add_kernel(x_ref, wdyn_ref, bdyn_ref, imp_ref, o_ref, *, inv_hw):
    # Single-pass path: whole (C, H*W) slab per batch element.
    x = x_ref[...]                                                # (bt, C, HW)
    xf = x.astype(jnp.float32)
    gram = jax.lax.dot_general(
        xf, xf,
        dimension_numbers=(((2,), (2,)), ((0,), (0,))),
        preferred_element_type=jnp.float32,
    ) * jnp.float32(inv_hw)                                       # (bt, C, C)
    s = _compute_shift(gram, wdyn_ref, bdyn_ref, imp_ref)         # (bt, C)
    o_ref[...] = (xf + s[:, :, None]).astype(o_ref.dtype)


def _gram_shift_kernel(x_ref, wdyn_ref, bdyn_ref, imp_ref, s_ref, gram_acc, *, inv_hw):
    # Fallback pass 1: accumulate Gram over H*W chunks, emit shift at the last chunk.
    k = pl.program_id(1)

    @pl.when(k == 0)
    def _():
        gram_acc[...] = jnp.zeros_like(gram_acc)

    x = x_ref[...].astype(jnp.float32)                            # (bt, C, hw_chunk)
    gram_acc[...] += jax.lax.dot_general(
        x, x,
        dimension_numbers=(((2,), (2,)), ((0,), (0,))),
        preferred_element_type=jnp.float32,
    )

    @pl.when(k == pl.num_programs(1) - 1)
    def _():
        gram = gram_acc[...] * jnp.float32(inv_hw)
        s = _compute_shift(gram, wdyn_ref, bdyn_ref, imp_ref)     # (bt, C)
        s_ref[...] = s[:, :, None]


def _broadcast_add_kernel(x_ref, s_ref, o_ref):
    # Fallback pass 2: stream out = x + s (broadcast over the spatial lanes).
    o_ref[...] = (x_ref[...].astype(jnp.float32) + s_ref[...]).astype(o_ref.dtype)


# ------------------------------- wrapper --------------------------------------

def implicit_add_c(x, imp, w_dyn, b_dyn, *, block_budget_bytes=None):
    """x: (B, C, H, W); imp: (1, C, num_imp); w_dyn: (num_imp, C*C); b_dyn: (num_imp,)."""
    B, C, H, W = x.shape
    hw = H * W
    num_imp = imp.shape[-1]
    inv_hw = 1.0 / float(hw)

    itemsize = jnp.dtype(x.dtype).itemsize
    sub = max(8, 32 // itemsize)              # sublane granularity: 8 f32 / 16 bf16 / 32 i8
    c_pad = _round_up(C, sub)

    kind = _tpu_kind()
    vmem_budget = _vmem_budget_bytes(kind)
    two_tc = _two_tensorcores(kind)

    # Parameters in native orientation (no host transpose), resident via constant index_map.
    wdyn_2d = w_dyn.reshape(num_imp, C * C).astype(jnp.float32)   # lane-dense along C*C
    bdyn_2d = b_dyn.reshape(1, num_imp).astype(jnp.float32)
    imp_2d = imp.reshape(C, num_imp).astype(jnp.float32)
    param_bytes = (
        _round_up(num_imp, 8) * _round_up(C * C, 128) * 4
        + 8 * 128 * 4
        + _round_up(C, 8) * _round_up(num_imp, 128) * 4
    )

    if block_budget_bytes is None:
        # Budget one block: 2x in + 2x out double-buffered blocks + params + headroom.
        block_budget = max(1, (vmem_budget - param_bytes - 4 * 1024 * 1024) // 5)
    else:
        block_budget = max(1, int(block_budget_bytes))

    x_flat = x.reshape(B, C, hw)
    per_elem = c_pad * _round_up(hw, 128) * itemsize              # VMEM footprint, incl. padding
    max_bt = block_budget // per_elem

    def pick_bt(cap):
        if two_tc and B >= 2:
            # 2 TensorCores: keep >= 2 grid steps, prefer an even step count.
            cap2 = max(1, min(cap, B // 2))
            cands = [d for d in range(cap2, 0, -1) if B % d == 0]
            even = [d for d in cands if (B // d) % 2 == 0]
            return even[0] if even else cands[0]
        # Single-TC chips: take the biggest divisor block (fewer, fatter steps).
        return _largest_divisor_at_most(B, cap)

    def _cparams(sem):
        return pltpu.CompilerParams(dimension_semantics=sem, vmem_limit_bytes=vmem_budget)

    if max_bt >= 1:
        # ---------------- single-pass path ----------------
        bt = pick_bt(max_bt)
        grid_b = B // bt
        out_flat = pl.pallas_call(
            partial(_implicit_add_kernel, inv_hw=inv_hw),
            out_shape=jax.ShapeDtypeStruct((B, C, hw), x.dtype),
            grid_spec=pltpu.PrefetchScalarGridSpec(
                num_scalar_prefetch=0,
                grid=(grid_b,),
                in_specs=[
                    pl.BlockSpec((bt, C, hw), lambda b: (b, 0, 0)),
                    pl.BlockSpec((num_imp, C * C), lambda b: (0, 0)),
                    pl.BlockSpec((1, num_imp), lambda b: (0, 0)),
                    pl.BlockSpec((C, num_imp), lambda b: (0, 0)),
                ],
                out_specs=pl.BlockSpec((bt, C, hw), lambda b: (b, 0, 0)),
            ),
            compiler_params=_cparams(("parallel",)),
        )(x_flat, wdyn_2d, bdyn_2d, imp_2d)
        return out_flat.reshape(B, C, H, W)

    # ---------------- spatial-chunked fallback ----------------
    # Only this rare large-spatial path may pad H*W (and only when it is not a
    # multiple of 128); zero columns contribute nothing to the Gram sum.
    hw_pad = hw if hw % 128 == 0 else _round_up(hw, 128)
    x_in = x_flat if hw_pad == hw else jnp.pad(x_flat, ((0, 0), (0, 0), (0, hw_pad - hw)))
    n128 = hw_pad // 128
    chunk_unit = c_pad * 128 * itemsize
    max_chunks = max(1, block_budget // chunk_unit)
    d = _largest_divisor_at_most(n128, max_chunks)
    hw_chunk = 128 * d
    grid_hw = n128 // d

    per_elem_chunk = chunk_unit * d
    gram_bytes = max(1, C * C * 4)            # f32 Gram accumulator scratch per element
    max_bt_f = max(1, min(block_budget // per_elem_chunk, block_budget // gram_bytes))
    bt = pick_bt(max_bt_f)
    grid_b = B // bt
    # TODO(synk): no channel tiling -- if round_up(C,8)*128*4 alone exceeds the VMEM
    # budget (C in the tens of thousands) this path still overflows.

    # Pass 1: per-batch, per-channel shift s of shape (B, C, 1).
    s = pl.pallas_call(
        partial(_gram_shift_kernel, inv_hw=inv_hw),
        out_shape=jax.ShapeDtypeStruct((B, C, 1), jnp.float32),
        grid_spec=pltpu.PrefetchScalarGridSpec(
            num_scalar_prefetch=0,
            grid=(grid_b, grid_hw),
            in_specs=[
                pl.BlockSpec((bt, C, hw_chunk), lambda b, k: (b, 0, k)),
                pl.BlockSpec((num_imp, C * C), lambda b, k: (0, 0)),
                pl.BlockSpec((1, num_imp), lambda b, k: (0, 0)),
                pl.BlockSpec((C, num_imp), lambda b, k: (0, 0)),
            ],
            out_specs=pl.BlockSpec((bt, C, 1), lambda b, k: (b, 0, 0)),
            scratch_shapes=[pltpu.VMEM((bt, C, C), jnp.float32)],
        ),
        compiler_params=_cparams(("parallel", "arbitrary")),
    )(x_in, wdyn_2d, bdyn_2d, imp_2d)

    # Pass 2: stream out = x + s.
    out_flat = pl.pallas_call(
        _broadcast_add_kernel,
        out_shape=jax.ShapeDtypeStruct((B, C, hw_pad), x.dtype),
        grid_spec=pltpu.PrefetchScalarGridSpec(
            num_scalar_prefetch=0,
            grid=(grid_b, grid_hw),
            in_specs=[
                pl.BlockSpec((bt, C, hw_chunk), lambda b, k: (b, 0, k)),
                pl.BlockSpec((bt, C, 1), lambda b, k: (b, 0, 0)),
            ],
            out_specs=pl.BlockSpec((bt, C, hw_chunk), lambda b, k: (b, 0, k)),
        ),
        compiler_params=_cparams(("parallel", "parallel")),
    )(x_in, s)

    if hw_pad != hw:
        out_flat = out_flat[:, :, :hw]
    return out_flat.reshape(B, C, H, W)


# ------------------------------- reference ------------------------------------

def implicit_add_c_reference(x, imp, w_dyn, b_dyn):
    """Pure-JAX reference mirroring the PyTorch module (gram_mode='gram')."""
    B, C, H, W = x.shape
    hw = H * W
    xf = x.reshape(B, C, hw)
    gram = jnp.einsum("bch,bdh->bcd", xf, xf) / hw                # (B, C, C)
    gram_ = gram.reshape(B, C * C)
    p = gram_ @ w_dyn.T + b_dyn                                   # (B, num_imp)
    p = p[:, :, None]                                             # (B, num_imp, 1)
    p = p / (p.sum(axis=1, keepdims=True) + 1e-12)
    imp1 = jnp.matmul(imp, p)                                     # (B, C, 1)
    select_imp = imp1[:, :, :, None]                              # (B, C, 1, 1)
    return select_imp + x


if __name__ == "__main__":
    # Small shapes consistent with the module: batch=2, channel=4, spatial=16x16.
    B, C, H, W = 2, 4, 16, 16
    num_imp = 4

    key = jax.random.PRNGKey(0)
    k_x, k_imp, k_w, k_b = jax.random.split(key, 4)

    x = jax.random.normal(k_x, (B, C, H, W), dtype=jnp.float32)
    # Deterministic synthetic parameters (shapes from Implicit_C.__init__, gram_mode='gram').
    imp = 0.02 * jax.random.normal(k_imp, (1, C, num_imp), dtype=jnp.float32)
    bound = 1.0 / ((C * C) ** 0.5)
    w_dyn = jax.random.uniform(k_w, (num_imp, C * C), jnp.float32, -bound, bound)
    b_dyn = jax.random.uniform(k_b, (num_imp,), jnp.float32, -bound, bound)

    # TODO(synk): gram_mode='gram_4' branch (max/mean/diag/linear pooling) not implemented;
    # the module default ('gram') is what this kernel reproduces.

    ref = implicit_add_c_reference(x, imp, w_dyn, b_dyn)

    # 1) Single-pass path (auto generation-aware block sizing).
    out = jax.block_until_ready(implicit_add_c(x, imp, w_dyn, b_dyn))
    assert out.shape == (B, C, H, W)
    assert jnp.allclose(out, ref, atol=1e-5, rtol=1e-5), "single-pass mismatch vs reference"

    # 2) Spatial-chunked fallback path (forced via a tiny per-block budget).
    out_chunked = jax.block_until_ready(
        implicit_add_c(x, imp, w_dyn, b_dyn, block_budget_bytes=4096))
    assert jnp.allclose(out_chunked, ref, atol=1e-5, rtol=1e-5), "chunked mismatch vs reference"

    print("KERNEL_OK")
</pallas_src>

<mosaic_0001>
module attributes {stable_mosaic.version = 11 : i64} {
  func.func @_implicit_add_kernel(%arg0: i32, %arg1: memref<2x4x256xf32, #tpu.memory_space<vmem>>, %arg2: memref<4x16xf32, #tpu.memory_space<vmem>>, %arg3: memref<1x4xf32, #tpu.memory_space<vmem>>, %arg4: memref<4x4xf32, #tpu.memory_space<vmem>>, %arg5: memref<2x4x256xf32, #tpu.memory_space<vmem>>) attributes {dimension_semantics = [#tpu.dimension_semantics<parallel>], iteration_bounds = array<i64: 1>, scalar_prefetch = 0 : i64, scratch_operands = 0 : i64, tpu.core_type = #tpu.core_type<tc>, window_params = [{transform_indices = @transform_0, window_bounds = array<i64: 2, 4, 256>}, {pipeline_mode = #tpu.pipeline_mode<synchronous>, transform_indices = @transform_1, window_bounds = array<i64: 4, 16>}, {pipeline_mode = #tpu.pipeline_mode<synchronous>, transform_indices = @transform_2, window_bounds = array<i64: 1, 4>}, {pipeline_mode = #tpu.pipeline_mode<synchronous>, transform_indices = @transform_3, window_bounds = array<i64: 4, 4>}, {transform_indices = @transform_4, window_bounds = array<i64: 2, 4, 256>}]} {
    %c0 = arith.constant 0 : index
    %c0_0 = arith.constant 0 : index
    %c0_1 = arith.constant 0 : index
    %0 = vector.load %arg1[%c0, %c0_0, %c0_1] : memref<2x4x256xf32, #tpu.memory_space<vmem>>, vector<2x4x256xf32>
    %cst = arith.constant dense<0.000000e+00> : vector<2x4x4xf32>
    %1 = tpu.matmul %0, %0, %cst {dimension_numbers = #tpu.dot_dimension_numbers<[2], [2], [1], [1], [0, 0, 0, 1, 1, 1], [0], [0]>} : vector<2x4x256xf32>, vector<2x4x256xf32>, vector<2x4x4xf32> -> vector<2x4x4xf32>
    %cst_2 = arith.constant 3.906250e-03 : f32
    %2 = vector.broadcast %cst_2 : f32 to vector<2x4x4xf32>
    %3 = arith.mulf %1, %2 : vector<2x4x4xf32>
    %4 = vector.shape_cast %3 : vector<2x4x4xf32> to vector<2x16xf32>
    %c0_3 = arith.constant 0 : index
    %c0_4 = arith.constant 0 : index
    %5 = vector.load %arg2[%c0_3, %c0_4] : memref<4x16xf32, #tpu.memory_space<vmem>>, vector<4x16xf32>
    %cst_5 = arith.constant dense<0.000000e+00> : vector<2x4xf32>
    %6 = tpu.matmul %4, %5, %cst_5 {dimension_numbers = #tpu.dot_dimension_numbers<[1], [1], [0], [0], [0, 0, 1, 0], [], []>} : vector<2x16xf32>, vector<4x16xf32>, vector<2x4xf32> -> vector<2x4xf32>
    %c0_6 = arith.constant 0 : index
    %c0_7 = arith.constant 0 : index
    %7 = vector.load %arg3[%c0_6, %c0_7] : memref<1x4xf32, #tpu.memory_space<vmem>>, vector<1x4xf32>
    %8 = vector.broadcast %7 : vector<1x4xf32> to vector<2x4xf32>
    %9 = arith.addf %6, %8 : vector<2x4xf32>
    %cst_8 = arith.constant dense<0.000000e+00> : vector<2xf32>
    %10 = vector.multi_reduction <add>, %9, %cst_8 [1] : vector<2x4xf32> to vector<2xf32>
    %11 = vector.shape_cast %10 : vector<2xf32> to vector<2x1xf32>
    %cst_9 = arith.constant 9.99999996E-13 : f32
    %12 = vector.broadcast %cst_9 : f32 to vector<2x1xf32>
    %13 = arith.addf %11, %12 : vector<2x1xf32>
    %14 = vector.broadcast %13 : vector<2x1xf32> to vector<2x4xf32>
    %15 = arith.divf %9, %14 : vector<2x4xf32>
    %c0_10 = arith.constant 0 : index
    %c0_11 = arith.constant 0 : index
    %16 = vector.load %arg4[%c0_10, %c0_11] : memref<4x4xf32, #tpu.memory_space<vmem>>, vector<4x4xf32>
    %cst_12 = arith.constant dense<0.000000e+00> : vector<2x4xf32>
    %17 = tpu.matmul %15, %16, %cst_12 {dimension_numbers = #tpu.dot_dimension_numbers<[1], [1], [0], [0], [0, 0, 1, 0], [], []>} : vector<2x4xf32>, vector<4x4xf32>, vector<2x4xf32> -> vector<2x4xf32>
    %18 = vector.shape_cast %17 : vector<2x4xf32> to vector<2x4x1xf32>
    %19 = vector.broadcast %18 : vector<2x4x1xf32> to vector<2x4x256xf32>
    %20 = arith.addf %0, %19 : vector<2x4x256xf32>
    %c0_13 = arith.constant 0 : index
    %c0_14 = arith.constant 0 : index
    %c0_15 = arith.constant 0 : index
    %21 = vector.load %arg5[%c0_13, %c0_14, %c0_15] : memref<2x4x256xf32, #tpu.memory_space<vmem>>, vector<2x4x256xf32>
    tpu.vector_store %arg5[%c0_13, %c0_14, %c0_15], %20 {strides = array<i32>} : memref<2x4x256xf32, #tpu.memory_space<vmem>>, vector<2x4x256xf32>,
    return
  }
  func.func @transform_0(%arg0: i32) -> (i32, i32, i32) {
    %c0_i32 = arith.constant 0 : i32
    %c0_i32_0 = arith.constant 0 : i32
    %c0_i32_1 = arith.constant 0 : i32
    return %arg0, %c0_i32, %c0_i32_0 : i32, i32, i32
  }
  func.func @transform_1(%arg0: i32) -> (i32, i32) {
    %c0_i32 = arith.constant 0 : i32
    %c0_i32_0 = arith.constant 0 : i32
    %c0_i32_1 = arith.constant 0 : i32
    return %c0_i32, %c0_i32_0 : i32, i32
  }
  func.func @transform_2(%arg0: i32) -> (i32, i32) {
    %c0_i32 = arith.constant 0 : i32
    %c0_i32_0 = arith.constant 0 : i32
    %c0_i32_1 = arith.constant 0 : i32
    return %c0_i32, %c0_i32_0 : i32, i32
  }
  func.func @transform_3(%arg0: i32) -> (i32, i32) {
    %c0_i32 = arith.constant 0 : i32
    %c0_i32_0 = arith.constant 0 : i32
    %c0_i32_1 = arith.constant 0 : i32
    return %c0_i32, %c0_i32_0 : i32, i32
  }
  func.func @transform_4(%arg0: i32) -> (i32, i32, i32) {
    %c0_i32 = arith.constant 0 : i32
    %c0_i32_0 = arith.constant 0 : i32
    %c0_i32_1 = arith.constant 0 : i32
    return %arg0, %c0_i32, %c0_i32_0 : i32, i32, i32
  }
}

</mosaic_0001>

<llo_original>
// kernel: tpu_custom_call.1
$region0: #{tpu_custom_call.1}
  #allocation0 [shape = 'u32[]', space=smem, size = 0x4, offset = 0x4, fixed_abs, tag = 'smem constant byte address 0x4 - core index']
  #allocation1 [shape = 'u32[144,128]{1,0:T(1,128)}', space=vmem, size = 0x12000, scoped, tag = 'internal scratch']
  %s0 = inlined_call_operand.hbm [shape: f32[2,4,256], index: 0, kind: input, shape index: {}]
  %s1 = inlined_call_operand.hbm [shape: f32[4,16], index: 1, kind: input, shape index: {}]
  %s2 = inlined_call_operand.vmem [shape: f32[1,4], index: 2, kind: input, shape index: {}]
  %s3 = inlined_call_operand.vmem [shape: f32[4,4], index: 3, kind: input, shape index: {}]
  %s4 = inlined_call_operand.hbm [shape: f32[2,4,256], index: 4, kind: output, shape index: {}]
  %s5 = sld [smem:[#allocation0]]
  $region34: #{tpu_custom_call.1} parent=0
    _
  %s7 = ssub.s32 1, %s5
  %s8 = scalar_select 0, %s7, %s5
  $region1: #{tpu_custom_call.1} parent=0
    #allocation2 [shape = 'u8[8192]{0}', space=vmem, size = 0x2000, scoped, tag = 'input window, operand 0, single buffered']
    #allocation3 [shape = 's32[1]{0}', space=sflag, size = 0x4, scoped, tag = 'scoped memory for tpu_custom_call.1']
    #allocation4 [shape = 's32[1]{0}', space=sflag, size = 0x4, scoped, tag = 'scoped memory for tpu_custom_call.1']
    #allocation5 [shape = 'u8[2048]{0}', space=vmem, size = 0x800, scoped, tag = 'input window, operand 1, single buffered']
    #allocation6 [shape = 's32[1]{0}', space=sflag, size = 0x4, scoped, tag = 'scoped memory for tpu_custom_call.1']
    #allocation7 [shape = 'u8[8192]{0}', space=vmem, size = 0x2000, scoped, tag = 'output window, operand 0, single buffered']
    %9 = vsyncpa [#allocation3], 0
    %10 = vsyncpa [#allocation6], 0
    %11 = vsyncpa [#allocation4], 0
    // Predicated region
    $region2: #{tpu_custom_call.1} parent=1 // pred_check
      _
    $region3: #{tpu_custom_call.1} parent=1 // pred_check_branch
      %13 = sbr.rel (0) target = $region5
    $region4: #{tpu_custom_call.1} parent=1 // pred_region
      %s15 = ssub.s32 256, 256
      %16 = vsyncadd [#allocation3], %s15
      %s17 = sshll.u32 [#allocation2], 4
      %s18 = int_to_ptr.vmem [resolvable:$true] %s17
      %23 = dma.hbm_to_vmem [thread:$0]  %s0, 256, %s18, [#allocation3], 128, 128, 8
    $region5: #{tpu_custom_call.1} parent=1 // pred_fallthru
      _
    // Predicated region
    $region6: #{tpu_custom_call.1} parent=1 // pred_check
      _
    $region7: #{tpu_custom_call.1} parent=1 // pred_check_branch
      %25 = sbr.rel (0) target = $region9
    $region8: #{tpu_custom_call.1} parent=1 // pred_region
      %s27 = ssub.s32 64, 64
      %28 = vsyncadd [#allocation6], %s27
      %s30 = sshll.u32 [#allocation5], 4
      %s31 = int_to_ptr.vmem [resolvable:$true] %s30
      %33 = dma.hbm_to_vmem [thread:$0]  %s1, 64, %s31, [#allocation6]
    $region9: #{tpu_custom_call.1} parent=1 // pred_fallthru
      _
    // Predicated region
    $region10: #{tpu_custom_call.1} parent=1 // pred_check
      _
    $region11: #{tpu_custom_call.1} parent=1 // pred_check_branch
      %35 = sbr.rel (0) target = $region13
    $region12: #{tpu_custom_call.1} parent=1 // pred_region
      _
    $region13: #{tpu_custom_call.1} parent=1 // pred_fallthru
      _
    // Predicated region
    $region14: #{tpu_custom_call.1} parent=1 // pred_check
      _
    $region15: #{tpu_custom_call.1} parent=1 // pred_check_branch
      %37 = sbr.rel (0) target = $region17
    $region16: #{tpu_custom_call.1} parent=1 // pred_region
      _
    $region17: #{tpu_custom_call.1} parent=1 // pred_fallthru
      _
    // Predicated region
    $region18: #{tpu_custom_call.1} parent=1 // pred_check
      _
    $region19: #{tpu_custom_call.1} parent=1 // pred_check_branch
      %39 = sbr.rel (0) target = $region21
    $region20: #{tpu_custom_call.1} parent=1 // pred_region
      %40 = dma.done [#allocation3], 256
    $region21: #{tpu_custom_call.1} parent=1 // pred_fallthru
      _
    // Predicated region
    $region22: #{tpu_custom_call.1} parent=1 // pred_check
      _
    $region23: #{tpu_custom_call.1} parent=1 // pred_check_branch
      %42 = sbr.rel (0) target = $region25
    $region24: #{tpu_custom_call.1} parent=1 // pred_region
      %43 = dma.done [#allocation6], 64
    $region25: #{tpu_custom_call.1} parent=1 // pred_fallthru
      _
    %v44 = vld [vmem:[#allocation2] sm:$0xff]
    %v45 = vld [vmem:[#allocation2 + $0x8] sm:$0xff]
    %v47 = vcombine.high %v44, %v44
    %49 = vmatprep.subr.mxu0 %v47
    %50 = vmatpush1.xpose.msra.mxu0 %v44
    %51 = vmatprep.subr.mxu0 0.0
    %52 = vmatpush1.xpose.msra.mxu0 0.0
    %53 = vmatprep.subr.mxu0 0.0
    %54 = vmatpush1.xpose.msra.mxu0 0.0
    %55 = vmatprep.subr.mxu0 0.0
    %56 = vmatpush1.xpose.msra.mxu0 0.0
    %57 = vmatprep.subr.mxu0 0.0
    %58 = vmatpush1.xpose.msra.mxu0 0.0
    %59 = vmatprep.subr.mxu0 0.0
    %60 = vmatpush1.xpose.msra.mxu0 0.0
    %61 = vmatprep.subr.mxu0 0.0
    %62 = vmatpush1.xpose.msra.mxu0 0.0
    %63 = vmatprep.subr.mxu0 0.0
    %64 = vmatpush1.xpose.msra.mxu0 0.0
    %65 = vmatprep.subr.mxu0 0.0
    %66 = vmatpush1.xpose.msra.mxu0 0.0
    %67 = vmatprep.subr.mxu0 0.0
    %68 = vmatpush1.xpose.msra.mxu0 0.0
    %69 = vmatprep.subr.mxu0 0.0
    %70 = vmatpush1.xpose.msra.mxu0 0.0
    %71 = vmatprep.subr.mxu0 0.0
    %72 = vmatpush1.xpose.msra.mxu0 0.0
    %73 = vmatprep.subr.mxu0 0.0
    %74 = vmatpush1.xpose.msra.mxu0 0.0
    %75 = vmatprep.subr.mxu0 0.0
    %76 = vmatpush1.xpose.msra.mxu0 0.0
    %77 = vmatprep.subr.mxu0 0.0
    %78 = vmatpush1.xpose.msra.mxu0 0.0
    %79 = vmatprep.subr.mxu0 0.0
    %80 = vmatpush1.xpose.msra.mxu0 0.0
    %81 = vmatprep.subr.mxu0 0.0
    %82 = vmatpush1.xpose.msra.mxu0 0.0
    %83 = vmatprep.subr.mxu0 0.0
    %84 = vmatpush1.xpose.msra.mxu0 0.0
    %85 = vmatprep.subr.mxu0 0.0
    %86 = vmatpush1.xpose.msra.mxu0 0.0
    %87 = vmatprep.subr.mxu0 0.0
    %88 = vmatpush1.xpose.msra.mxu0 0.0
    %89 = vmatprep.subr.mxu0 0.0
    %90 = vmatpush1.xpose.msra.mxu0 0.0
    %91 = vmatprep.subr.mxu0 0.0
    %92 = vmatpush1.xpose.msra.mxu0 0.0
    %93 = vmatprep.subr.mxu0 0.0
    %94 = vmatpush1.xpose.msra.mxu0 0.0
    %95 = vmatprep.subr.mxu0 0.0
    %96 = vmatpush1.xpose.msra.mxu0 0.0
    %97 = vmatprep.subr.mxu0 0.0
    %98 = vmatpush1.xpose.msra.mxu0 0.0
    %99 = vmatprep.subr.mxu0 0.0
    %100 = vmatpush1.xpose.msra.mxu0 0.0
    %101 = vmatprep.subr.mxu0 0.0
    %102 = vmatpush1.xpose.msra.mxu0 0.0
    %103 = vmatprep.subr.mxu0 0.0
    %104 = vmatpush1.xpose.msra.mxu0 0.0
    %105 = vmatprep.subr.mxu0 0.0
    %106 = vmatpush1.xpose.msra.mxu0 0.0
    %107 = vmatprep.subr.mxu0 0.0
    %108 = vmatpush1.xpose.msra.mxu0 0.0
    %109 = vmatprep.subr.mxu0 0.0
    %110 = vmatpush1.xpose.msra.mxu0 0.0
    %111 = vmatprep.subr.mxu0 0.0
    %112 = vmatpush1.xpose.msra.mxu0 0.0
    %113 = vmatprep.mubr.f32.mxu0 %v47
    %114 = vmatmul.mubr.f32.gmra.mrb[0].mxu0 %v44
    %v115 = vpop.f32.mrb[0].mxu0
    %v116 = vadd.f32 0.0, %v115
    %v117 = vpop.f32.mrb[0].mxu0
    %118 = vdwg.mxu0
    %v120 = vcombine.high %v45, %v45
    %122 = vmatprep.subr.mxu0 %v120
    %123 = vmatpush1.xpose.msra.mxu0 %v45
    %124 = vmatprep.subr.mxu0 0.0
    %125 = vmatpush1.xpose.msra.mxu0 0.0
    %126 = vmatprep.subr.mxu0 0.0
    %127 = vmatpush1.xpose.msra.mxu0 0.0
    %128 = vmatprep.subr.mxu0 0.0
    %129 = vmatpush1.xpose.msra.mxu0 0.0
    %130 = vmatprep.subr.mxu0 0.0
    %131 = vmatpush1.xpose.msra.mxu0 0.0
    %132 = vmatprep.subr.mxu0 0.0
    %133 = vmatpush1.xpose.msra.mxu0 0.0
    %134 = vmatprep.subr.mxu0 0.0
    %135 = vmatpush1.xpose.msra.mxu0 0.0
    %136 = vmatprep.subr.mxu0 0.0
    %137 = vmatpush1.xpose.msra.mxu0 0.0
    %138 = vmatprep.subr.mxu0 0.0
    %139 = vmatpush1.xpose.msra.mxu0 0.0
    %140 = vmatprep.subr.mxu0 0.0
    %141 = vmatpush1.xpose.msra.mxu0 0.0
    %142 = vmatprep.subr.mxu0 0.0
    %143 = vmatpush1.xpose.msra.mxu0 0.0
    %144 = vmatprep.subr.mxu0 0.0
    %145 = vmatpush1.xpose.msra.mxu0 0.0
    %146 = vmatprep.subr.mxu0 0.0
    %147 = vmatpush1.xpose.msra.mxu0 0.0
    %148 = vmatprep.subr.mxu0 0.0
    %149 = vmatpush1.xpose.msra.mxu0 0.0
    %150 = vmatprep.subr.mxu0 0.0
    %151 = vmatpush1.xpose.msra.mxu0 0.0
    %152 = vmatprep.subr.mxu0 0.0
    %153 = vmatpush1.xpose.msra.mxu0 0.0
    %154 = vmatprep.subr.mxu0 0.0
    %155 = vmatpush1.xpose.msra.mxu0 0.0
    %156 = vmatprep.subr.mxu0 0.0
    %157 = vmatpush1.xpose.msra.mxu0 0.0
    %158 = vmatprep.subr.mxu0 0.0
    %159 = vmatpush1.xpose.msra.mxu0 0.0
    %160 = vmatprep.subr.mxu0 0.0
    %161 = vmatpush1.xpose.msra.mxu0 0.0
    %162 = vmatprep.subr.mxu0 0.0
    %163 = vmatpush1.xpose.msra.mxu0 0.0
    %164 = vmatprep.subr.mxu0 0.0
    %165 = vmatpush1.xpose.msra.mxu0 0.0
    %166 = vmatprep.subr.mxu0 0.0
    %167 = vmatpush1.xpose.msra.mxu0 0.0
    %168 = vmatprep.subr.mxu0 0.0
    %169 = vmatpush1.xpose.msra.mxu0 0.0
    %170 = vmatprep.subr.mxu0 0.0
    %171 = vmatpush1.xpose.msra.mxu0 0.0
    %172 = vmatprep.subr.mxu0 0.0
    %173 = vmatpush1.xpose.msra.mxu0 0.0
    %174 = vmatprep.subr.mxu0 0.0
    %175 = vmatpush1.xpose.msra.mxu0 0.0
    %176 = vmatprep.subr.mxu0 0.0
    %177 = vmatpush1.xpose.msra.mxu0 0.0
    %178 = vmatprep.subr.mxu0 0.0
    %179 = vmatpush1.xpose.msra.mxu0 0.0
    %180 = vmatprep.subr.mxu0 0.0
    %181 = vmatpush1.xpose.msra.mxu0 0.0
    %182 = vmatprep.subr.mxu0 0.0
    %183 = vmatpush1.xpose.msra.mxu0 0.0
    %184 = vmatprep.subr.mxu0 0.0
    %185 = vmatpush1.xpose.msra.mxu0 0.0
    %186 = vmatprep.mubr.f32.mxu0 %v120
    %187 = vmatmul.mubr.f32.gmra.mrb[0].mxu0 %v45
    %v188 = vpop.f32.mrb[0].mxu0
    %v189 = vadd.f32 0.0, %v188
    %v190 = vpop.f32.mrb[0].mxu0
    %191 = vdwg.mxu0
    %v192 = vmul.f32 %v116, 0.00390625
    %v194 = vunpack.c.l.s4 1983009808
    %v195 = vunpack.c.0.s8 %v194
    %v196 = vlaneseq
    %v197 = vshrl.u32 %v196, 7
    %v198 = vsub.s32 %v195, %v197
    %v199 = vrot.slane %v192, %v198
    %v200 = vmul.f32 %v189, 0.00390625
    %v202 = vunpack.c.l.s4 1983009808
    %v203 = vunpack.c.0.s8 %v202
    %v204 = vlaneseq
    %v205 = vshrl.u32 %v204, 7
    %v206 = vsub.s32 %v203, %v205
    %v207 = vrot.slane %v200, %v206
    %v208 = vcombine.low %v199, %v207
    %v209 = vcombine.high %v199, %v207
    %v211 = vunpack.c.l.s4 1934713408
    %v212 = vunpack.c.0.s8 %v211
    %v213 = vlaneseq
    %v214 = vshrl.u32 %v213, 7
    %v215 = vsub.s32 %v212, %v214
    %v216 = vrot.slane %v208, %v215
    %v218 = vunpack.c.l.s4 1934713408
    %v219 = vunpack.c.0.s8 %v218
    %v220 = vlaneseq
    %v221 = vshrl.u32 %v220, 7
    %v222 = vsub.s32 %v219, %v221
    %v223 = vrot.slane %v209, %v222
    %v224 = vcombine.high %v216, 0.0
    %v225 = vcombine.high %v223, 0.0
    %227 = vrot.lane.b32.xlu0 %v224, 4
    %v228 = vpop.permute.xlu0 %227
    %231 = vrot.lane.b32.xlu0 %v223, 8
    %v232 = vpop.permute.xlu0 %231
    %235 = vrot.lane.b32.xlu0 %v225, 12
    %v236 = vpop.permute.xlu0 %235
    %vm238 = vcmask 31744
    %v239 = vsel %vm238, %v216, %v228
    %vm240 = vcmask 64512
    %v241 = vsel %vm240, %v239, %v232
    %vm242 = vcmask 97280
    %v243 = vsel %vm242, %v241, %v236
    %v244 = vld [vmem:[#allocation5] sm:$0xf]
    %v245 = vld [vmem:[%s2] sm:$0x1]
    %v247 = vlaneseq
    %v248 = vshrl.u32 %v247, 7
    %v249 = vsub.s32 0, %v248
    %v250 = vrot.slane %v245, %v249
    %vm252 = vcmask 130048
    %v254 = vsel %vm252, %v243, 0
    %v257 = vsel %vm252, %v244, 0
    %259 = vmatprep.subr.mxu0 0.0
    %260 = vmatpush1.xpose.msra.mxu0 %v257
    %261 = vmatprep.subr.mxu0 0.0
    %262 = vmatpush1.xpose.msra.mxu0 0.0
    %263 = vmatprep.subr.mxu0 0.0
    %264 = vmatpush1.xpose.msra.mxu0 0.0
    %265 = vmatprep.subr.mxu0 0.0
    %266 = vmatpush1.xpose.msra.mxu0 0.0
    %267 = vmatprep.subr.mxu0 0.0
    %268 = vmatpush1.xpose.msra.mxu0 0.0
    %269 = vmatprep.subr.mxu0 0.0
    %270 = vmatpush1.xpose.msra.mxu0 0.0
    %271 = vmatprep.subr.mxu0 0.0
    %272 = vmatpush1.xpose.msra.mxu0 0.0
    %273 = vmatprep.subr.mxu0 0.0
    %274 = vmatpush1.xpose.msra.mxu0 0.0
    %275 = vmatprep.subr.mxu0 0.0
    %276 = vmatpush1.xpose.msra.mxu0 0.0
    %277 = vmatprep.subr.mxu0 0.0
    %278 = vmatpush1.xpose.msra.mxu0 0.0
    %279 = vmatprep.subr.mxu0 0.0
    %280 = vmatpush1.xpose.msra.mxu0 0.0
    %281 = vmatprep.subr.mxu0 0.0
    %282 = vmatpush1.xpose.msra.mxu0 0.0
    %283 = vmatprep.subr.mxu0 0.0
    %284 = vmatpush1.xpose.msra.mxu0 0.0
    %285 = vmatprep.subr.mxu0 0.0
    %286 = vmatpush1.xpose.msra.mxu0 0.0
    %287 = vmatprep.subr.mxu0 0.0
    %288 = vmatpush1.xpose.msra.mxu0 0.0
    %289 = vmatprep.subr.mxu0 0.0
    %290 = vmatpush1.xpose.msra.mxu0 0.0
    %291 = vmatprep.subr.mxu0 0.0
    %292 = vmatpush1.xpose.msra.mxu0 0.0
    %293 = vmatprep.subr.mxu0 0.0
    %294 = vmatpush1.xpose.msra.mxu0 0.0
    %295 = vmatprep.subr.mxu0 0.0
    %296 = vmatpush1.xpose.msra.mxu0 0.0
    %297 = vmatprep.subr.mxu0 0.0
    %298 = vmatpush1.xpose.msra.mxu0 0.0
    %299 = vmatprep.subr.mxu0 0.0
    %300 = vmatpush1.xpose.msra.mxu0 0.0
    %301 = vmatprep.subr.mxu0 0.0
    %302 = vmatpush1.xpose.msra.mxu0 0.0
    %303 = vmatprep.subr.mxu0 0.0
    %304 = vmatpush1.xpose.msra.mxu0 0.0
    %305 = vmatprep.subr.mxu0 0.0
    %306 = vmatpush1.xpose.msra.mxu0 0.0
    %307 = vmatprep.subr.mxu0 0.0
    %308 = vmatpush1.xpose.msra.mxu0 0.0
    %309 = vmatprep.subr.mxu0 0.0
    %310 = vmatpush1.xpose.msra.mxu0 0.0
    %311 = vmatprep.subr.mxu0 0.0
    %312 = vmatpush1.xpose.msra.mxu0 0.0
    %313 = vmatprep.subr.mxu0 0.0
    %314 = vmatpush1.xpose.msra.mxu0 0.0
    %315 = vmatprep.subr.mxu0 0.0
    %316 = vmatpush1.xpose.msra.mxu0 0.0
    %317 = vmatprep.subr.mxu0 0.0
    %318 = vmatpush1.xpose.msra.mxu0 0.0
    %319 = vmatprep.subr.mxu0 0.0
    %320 = vmatpush1.xpose.msra.mxu0 0.0
    %321 = vmatprep.subr.mxu0 0.0
    %322 = vmatpush1.xpose.msra.mxu0 0.0
    %323 = vmatprep.mubr.f32.mxu0 0.0
    %324 = vmatmul.mubr.f32.gmra.mrb[0].mxu0 %v254
    %v325 = vpop.f32.mrb[0].mxu0
    %v326 = vadd.f32 %v250, %v325
    %v327 = vpop.f32.mrb[0].mxu0
    %328 = vdwg.mxu0
    %vm329 = vcmask 25600
    %v330 = vsel %vm329, %v326, 0.0
    %331 = vadd.xlane.f32.xlu0 %v330
    %v332 = vpop.xlane.xlu0 %331
    %v333 = vadd.f32 %v332, 1e-12
    %v334 = vrcp.pop %v333
    %v335 = vmul.f32 %v326, %v334
    %v336 = vld [vmem:[%s3] sm:$0xf]
    %v338 = vsel %vm238, %v335, 0
    %v341 = vsel %vm238, %v336, 0
    %343 = vmatprep.subr.mxu0 0.0
    %344 = vmatpush1.xpose.msra.mxu0 %v341
    %345 = vmatprep.subr.mxu0 0.0
    %346 = vmatpush1.xpose.msra.mxu0 0.0
    %347 = vmatprep.subr.mxu0 0.0
    %348 = vmatpush1.xpose.msra.mxu0 0.0
    %349 = vmatprep.subr.mxu0 0.0
    %350 = vmatpush1.xpose.msra.mxu0 0.0
    %351 = vmatprep.subr.mxu0 0.0
    %352 = vmatpush1.xpose.msra.mxu0 0.0
    %353 = vmatprep.subr.mxu0 0.0
    %354 = vmatpush1.xpose.msra.mxu0 0.0
    %355 = vmatprep.subr.mxu0 0.0
    %356 = vmatpush1.xpose.msra.mxu0 0.0
    %357 = vmatprep.subr.mxu0 0.0
    %358 = vmatpush1.xpose.msra.mxu0 0.0
    %359 = vmatprep.subr.mxu0 0.0
    %360 = vmatpush1.xpose.msra.mxu0 0.0
    %361 = vmatprep.subr.mxu0 0.0
    %362 = vmatpush1.xpose.msra.mxu0 0.0
    %363 = vmatprep.subr.mxu0 0.0
    %364 = vmatpush1.xpose.msra.mxu0 0.0
    %365 = vmatprep.subr.mxu0 0.0
    %366 = vmatpush1.xpose.msra.mxu0 0.0
    %367 = vmatprep.subr.mxu0 0.0
    %368 = vmatpush1.xpose.msra.mxu0 0.0
    %369 = vmatprep.subr.mxu0 0.0
    %370 = vmatpush1.xpose.msra.mxu0 0.0
    %371 = vmatprep.subr.mxu0 0.0
    %372 = vmatpush1.xpose.msra.mxu0 0.0
    %373 = vmatprep.subr.mxu0 0.0
    %374 = vmatpush1.xpose.msra.mxu0 0.0
    %375 = vmatprep.subr.mxu0 0.0
    %376 = vmatpush1.xpose.msra.mxu0 0.0
    %377 = vmatprep.subr.mxu0 0.0
    %378 = vmatpush1.xpose.msra.mxu0 0.0
    %379 = vmatprep.subr.mxu0 0.0
    %380 = vmatpush1.xpose.msra.mxu0 0.0
    %381 = vmatprep.subr.mxu0 0.0
    %382 = vmatpush1.xpose.msra.mxu0 0.0
    %383 = vmatprep.subr.mxu0 0.0
    %384 = vmatpush1.xpose.msra.mxu0 0.0
    %385 = vmatprep.subr.mxu0 0.0
    %386 = vmatpush1.xpose.msra.mxu0 0.0
    %387 = vmatprep.subr.mxu0 0.0
    %388 = vmatpush1.xpose.msra.mxu0 0.0
    %389 = vmatprep.subr.mxu0 0.0
    %390 = vmatpush1.xpose.msra.mxu0 0.0
    %391 = vmatprep.subr.mxu0 0.0
    %392 = vmatpush1.xpose.msra.mxu0 0.0
    %393 = vmatprep.subr.mxu0 0.0
    %394 = vmatpush1.xpose.msra.mxu0 0.0
    %395 = vmatprep.subr.mxu0 0.0
    %396 = vmatpush1.xpose.msra.mxu0 0.0
    %397 = vmatprep.subr.mxu0 0.0
    %398 = vmatpush1.xpose.msra.mxu0 0.0
    %399 = vmatprep.subr.mxu0 0.0
    %400 = vmatpush1.xpose.msra.mxu0 0.0
    %401 = vmatprep.subr.mxu0 0.0
    %402 = vmatpush1.xpose.msra.mxu0 0.0
    %403 = vmatprep.subr.mxu0 0.0
    %404 = vmatpush1.xpose.msra.mxu0 0.0
    %405 = vmatprep.subr.mxu0 0.0
    %406 = vmatpush1.xpose.msra.mxu0 0.0
    %407 = vmatprep.mubr.f32.mxu0 0.0
    %408 = vmatmul.mubr.f32.gmra.mrb[0].mxu0 %v338
    %v409 = vpop.f32.mrb[0].mxu0
    %v410 = vadd.f32 0.0, %v409
    %v411 = vpop.f32.mrb[0].mxu0
    %412 = vdwg.mxu0
    %v413 = vlaneseq
    %v414 = vshrl.u32 %v413, 7
    %v415 = vsub.s32 0, %v414
    %v416 = vrot.slane %v410, %v415
    %418 = vbcast.lane.b32.xlu0 %v416, 256
    %v419 = vpop.permute.xlu0 %418
    %v420 = vlaneseq
    %v421 = vshrl.u32 %v420, 7
    %v422 = vsub.s32 1, %v421
    %v423 = vrot.slane %v410, %v422
    %425 = vbcast.lane.b32.xlu0 %v423, 256
    %v426 = vpop.permute.xlu0 %425
    %v430 = vunpack.c.l.s4 839922192
    %v431 = vunpack.c.0.s8 %v430
    %v432 = vlaneseq
    %v433 = vshrl.u32 %v432, 7
    %v434 = vsub.s32 %v431, %v433
    %v435 = vrot.slane %v419, %v434
    %v437 = vunpack.c.l.s4 839922192
    %v438 = vunpack.c.0.s8 %v437
    %v439 = vlaneseq
    %v440 = vshrl.u32 %v439, 7
    %v441 = vsub.s32 %v438, %v440
    %v442 = vrot.slane %v426, %v441
    %v445 = vadd.f32 %v44, %v435
    %v446 = vadd.f32 %v45, %v442
    %447 = vst [vmem:[#allocation7] sm:$0xff] %v445
    %448 = vst [vmem:[#allocation7 + $0x8] sm:$0xff] %v446
    // Predicated region
    $region26: #{tpu_custom_call.1} parent=1 // pred_check
      _
    $region27: #{tpu_custom_call.1} parent=1 // pred_check_branch
      %450 = sbr.rel (0) target = $region29
    $region28: #{tpu_custom_call.1} parent=1 // pred_region
      %s452 = ssub.s32 256, 256
      %453 = vsyncadd [#allocation4], %s452
      %s454 = sshll.u32 [#allocation7], 4
      %s455 = int_to_ptr.vmem [resolvable:$true] %s454
      %460 = dma.vmem_to_hbm [thread:$0]  %s455, 256, %s4, [#allocation4], 128, 128, 8
    $region29: #{tpu_custom_call.1} parent=1 // pred_fallthru
      _
    // Predicated region
    $region30: #{tpu_custom_call.1} parent=1 // pred_check
      _
    $region31: #{tpu_custom_call.1} parent=1 // pred_check_branch
      %462 = sbr.rel (0) target = $region33
    $region32: #{tpu_custom_call.1} parent=1 // pred_region
      %463 = dma.done [#allocation4], 256
    $region33: #{tpu_custom_call.1} parent=1 // pred_fallthru
      _
    %464 = vsyncpa [#allocation3], 1
    %465 = vsyncpa [#allocation6], 1
    %466 = vsyncpa [#allocation4], 1

</llo_original>
